<compile_context>
chip_gen: v7x
topology: tpu7x:2x2x1
jax: 0.10.0
libtpu: 0.0.40
codegen_flags: <defaults>
</compile_context>

<pallas_src>
import math

import jax
import jax.numpy as jnp
from jax.experimental import pallas as pl
from jax.experimental.pallas import tpu as pltpu

_MIB = 1024 * 1024
_TARGET_BLOCK_BYTES = 8 * _MIB  # >=2 MiB lane-dense blocks reach ~85%+ of HBM roofline


def _round_up(x, m):
    return ((x + m - 1) // m) * m


def _round_down(x, m):
    return (x // m) * m


# --------------------------------------------------------------------------------------
# Kernels
# --------------------------------------------------------------------------------------
def _scse_fused_kernel(x_ref, w1_ref, b1_ref, w2_ref, b2_ref, ws_ref, bs_ref, o_ref):
    # x: (1, C, HW)  w1: (Chid, C)  b1: (Chid, 1)  w2: (C, Chid)  b2: (C, 1)
    # ws: (1, C)     bs: (1, 1)
    x = x_ref[0]                                                  # (C, HW), I/O dtype

    # ---- channel SE: global average pool (f32 accumulate) + tiny MLP on the MXU ----
    pooled = jnp.mean(x, axis=1, keepdims=True, dtype=jnp.float32)     # (C, 1)
    z1 = jnp.dot(w1_ref[...], pooled, preferred_element_type=jnp.float32) + b1_ref[...]
    z1 = jnp.maximum(z1, 0.0)                                     # (Chid, 1)
    z2 = jnp.dot(w2_ref[...], z1, preferred_element_type=jnp.float32) + b2_ref[...]
    cse = jax.nn.sigmoid(z2)                                      # (C, 1) per-channel gate

    # ---- spatial SE: (1,C) @ (C,HW) contraction on the MXU, DEFAULT precision ----
    # (perf review: HIGHEST forced 3-6 bf16 passes on the only HW-scaling matmul; the
    #  delta is pre-sigmoid and negligible for a gate.)
    s = jnp.dot(ws_ref[...].astype(x.dtype), x,
                preferred_element_type=jnp.float32) + bs_ref[...]
    sse = jax.nn.sigmoid(s)                                       # (1, HW) per-pixel gate

    # Single fused gate apply. The gate is built in the I/O dtype so bf16 activations
    # don't materialize an extra f32 (C, HW) temporary.
    gate = cse.astype(x.dtype) + sse.astype(x.dtype)              # (C, HW)
    o_ref[0] = x * gate


def _scse_apply_kernel(x_ref, cse_ref, ws_ref, bs_ref, o_ref):
    # x: (1, C, T)  cse: (1, C, 1) f32  ws: (1, C)  bs: (1, 1)
    x = x_ref[0]                                                  # (C, T), I/O dtype
    s = jnp.dot(ws_ref[...].astype(x.dtype), x,
                preferred_element_type=jnp.float32) + bs_ref[...]
    sse = jax.nn.sigmoid(s)                                       # (1, T)
    gate = cse_ref[0].astype(x.dtype) + sse.astype(x.dtype)       # (C, T)
    o_ref[0] = x * gate


# --------------------------------------------------------------------------------------
# Wrappers
# --------------------------------------------------------------------------------------
def _scse_fused(x_flat, w1, b1, w2, b2, ws, bs, vmem_limit):
    N, C, HW = x_flat.shape
    Chid = w1.shape[0]
    full = lambda shape: pl.BlockSpec(shape, lambda n: (0,) * len(shape))

    return pl.pallas_call(
        _scse_fused_kernel,
        out_shape=jax.ShapeDtypeStruct((N, C, HW), x_flat.dtype),
        grid_spec=pltpu.PrefetchScalarGridSpec(
            num_scalar_prefetch=0,
            grid=(N,),
            in_specs=[
                pl.BlockSpec((1, C, HW), lambda n: (n, 0, 0)),    # x
                full((Chid, C)),                                  # w1
                full((Chid, 1)),                                  # b1
                full((C, Chid)),                                  # w2
                full((C, 1)),                                     # b2
                full((1, C)),                                     # ws (row layout -> MXU)
                full((1, 1)),                                     # bs
            ],
            out_specs=pl.BlockSpec((1, C, HW), lambda n: (n, 0, 0)),
        ),
        compiler_params=pltpu.CompilerParams(
            dimension_semantics=("parallel",),
            vmem_limit_bytes=int(vmem_limit),
        ),
    )(x_flat, w1, b1, w2, b2, ws, bs)


def _scse_tiled(x_flat, w1, b1, w2, b2, ws, bs, tile, vmem_limit):
    N, C, HW = x_flat.shape
    n_tiles = pl.cdiv(HW, tile)

    # Pass 1: cSE gate in plain JAX (tiny; negligible flops, keeps the streaming kernel
    # free of lane-sparse params). Pooling accumulates in f32 even for bf16 activations.
    pooled = jnp.mean(x_flat, axis=2, dtype=jnp.float32)          # (N, C)
    z1 = jnp.maximum(pooled @ w1.T + b1[:, 0], 0.0)               # (N, Chid)
    z2 = z1 @ w2.T + b2[:, 0]                                     # (N, C)
    cse = jax.nn.sigmoid(z2)[:, :, None].astype(jnp.float32)      # (N, C, 1)

    # Pass 2: streaming gate-apply, cdiv-tiled over the spatial axis. Padded lanes in the
    # last block are masked on writeback; the sSE dot contracts over C so padded lanes
    # cannot contaminate valid outputs.
    return pl.pallas_call(
        _scse_apply_kernel,
        out_shape=jax.ShapeDtypeStruct((N, C, HW), x_flat.dtype),
        grid_spec=pltpu.PrefetchScalarGridSpec(
            num_scalar_prefetch=0,
            grid=(N, n_tiles),
            in_specs=[
                pl.BlockSpec((1, C, tile), lambda n, t: (n, 0, t)),  # x tile
                pl.BlockSpec((1, C, 1), lambda n, t: (n, 0, 0)),     # cse gate
                pl.BlockSpec((1, C), lambda n, t: (0, 0)),           # ws
                pl.BlockSpec((1, 1), lambda n, t: (0, 0)),           # bs
            ],
            out_specs=pl.BlockSpec((1, C, tile), lambda n, t: (n, 0, t)),
        ),
        compiler_params=pltpu.CompilerParams(
            dimension_semantics=("parallel", "parallel"),
            vmem_limit_bytes=int(vmem_limit),
        ),
    )(x_flat, cse, ws, bs)


# --------------------------------------------------------------------------------------
# Dispatch helpers
# --------------------------------------------------------------------------------------
def _vmem_caps():
    """(physical VMEM capacity, max vmem_limit we will ever request)."""
    try:
        capacity = int(pltpu.get_tpu_info().vmem_capacity_bytes)
    except Exception:  # pragma: no cover - conservative (v7x-sized) fallback
        capacity = 64 * _MIB
    return capacity, capacity - 8 * _MIB


def _pick_tile(HW, C, itemsize, budget, min_tiles=1):
    """Lane-dense (multiple-of-128) spatial tile sized by bytes (~8 MiB blocks),
    bounded by the VMEM budget (2 in + 2 out double-buffered slabs) and optionally
    split into >= min_tiles blocks so multiple TensorCores get work."""
    hw_pad = _round_up(HW, 128)
    per_lane = C * itemsize
    by_budget = (budget - 4 * _MIB) // (4 * per_lane)
    by_target = _TARGET_BLOCK_BYTES // per_lane
    by_split = hw_pad // max(1, min_tiles)
    t = min(hw_pad, by_split, min(by_budget, by_target))
    return max(128, _round_down(t, 128))


def scse_forward(x, w1, b1, w2, b2, ws, bs, *, vmem_budget_bytes=None):
    """x: (N, C, H, W) float32 or bfloat16. Returns (N, C, H, W) in the input dtype."""
    N, C, H, W = x.shape
    HW = H * W
    x_flat = x.reshape(N, C, HW)
    itemsize = jnp.dtype(x.dtype).itemsize

    capacity, vmem_cap = _vmem_caps()
    if vmem_budget_bytes is None:
        vmem_budget_bytes = (3 * capacity) // 4          # ~96 MiB on v5e/v6e, ~48 MiB on v7x
    budget = min(int(vmem_budget_bytes), vmem_cap)       # never over-subscribe physical VMEM

    param_bytes = sum(int(p.size) * jnp.dtype(p.dtype).itemsize
                      for p in (w1, b1, w2, b2, ws, bs))

    # Layout-padded per-image slab: sublane tile is 8 for f32, 16 for bf16; lane tile 128.
    pack = max(1, 4 // itemsize)
    c_pad = _round_up(C, 8 * pack)
    hw_pad = _round_up(HW, 128)
    slab = c_pad * hw_pad * itemsize

    # 2 double-buffered input + 2 output slabs + 1 gate temporary, plus buffered params.
    fused_bytes = 5 * slab + 2 * param_bytes

    # v7x-class chips (~64 MiB VMEM/TC, 2 TensorCores): a grid of (1,) leaves one core
    # idle, so for N == 1 prefer the tiled path with a parallel spatial axis.
    two_core_chip = capacity <= 80 * _MIB
    prefer_tiled_for_cores = two_core_chip and N == 1 and hw_pad >= 256

    if fused_bytes + 4 * _MIB <= budget and not prefer_tiled_for_cores:
        vmem_limit = min(max(fused_bytes + 8 * _MIB, 32 * _MIB), vmem_cap)
        out = _scse_fused(x_flat, w1, b1, w2, b2, ws, bs, vmem_limit)
    else:
        min_tiles = 8 if prefer_tiled_for_cores else 1
        tile = _pick_tile(HW, C, itemsize, budget, min_tiles=min_tiles)
        tiled_bytes = 4 * c_pad * tile * itemsize + 2 * param_bytes
        vmem_limit = min(max(tiled_bytes + 8 * _MIB, 32 * _MIB), vmem_cap)
        out = _scse_tiled(x_flat, w1, b1, w2, b2, ws, bs, tile, vmem_limit)

    return out.reshape(N, C, H, W)


# --------------------------------------------------------------------------------------
# Params / reference
# --------------------------------------------------------------------------------------
def init_params(key, in_channels, reduction=16):
    """Mimics the PyTorch _init_weights: conv weight ~ N(0, sqrt(2/fan_out)), bias = 0."""
    chid = max(1, in_channels // reduction)
    k1, k2, k3 = jax.random.split(key, 3)

    w1 = jax.random.normal(k1, (chid, in_channels), jnp.float32) * math.sqrt(2.0 / chid)
    b1 = jnp.zeros((chid, 1), jnp.float32)
    w2 = jax.random.normal(k2, (in_channels, chid), jnp.float32) * math.sqrt(2.0 / in_channels)
    b2 = jnp.zeros((in_channels, 1), jnp.float32)
    ws = jax.random.normal(k3, (1, in_channels), jnp.float32) * math.sqrt(2.0 / 1.0)
    bs = jnp.zeros((1, 1), jnp.float32)
    return w1, b1, w2, b2, ws, bs


def scse_reference(x, w1, b1, w2, b2, ws, bs):
    """Pure-JAX f32 ground truth of the PyTorch forward (NCHW), HIGHEST precision."""
    hp = jax.lax.Precision.HIGHEST
    pooled = jnp.mean(x, axis=(2, 3))                                  # (N, C)
    z1 = jnp.maximum(jnp.dot(pooled, w1.T, precision=hp) + b1[:, 0], 0.0)
    z2 = jnp.dot(z1, w2.T, precision=hp) + b2[:, 0]                    # (N, C)
    cse = jax.nn.sigmoid(z2)[:, :, None, None]                         # (N, C, 1, 1)
    s = jnp.einsum("nchw,c->nhw", x, ws[0], precision=hp) + bs[0, 0]   # (N, H, W)
    sse = jax.nn.sigmoid(s)[:, None, :, :]                             # (N, 1, H, W)
    return x * cse + x * sse


if __name__ == "__main__":
    key = jax.random.PRNGKey(0)
    kx, kp = jax.random.split(key)

    N, C, H, W = 2, 32, 16, 16      # in_channels=32, reduction=16 -> hidden=2
    x = jax.random.normal(kx, (N, C, H, W), jnp.float32)
    params = init_params(kp, C, reduction=16)

    y_ref = scse_reference(x, *params)

    # Tolerances: the kernel now runs its dots at DEFAULT MXU precision (perf review
    # opt #1), i.e. bf16 passes with f32 accumulation; the resulting pre-sigmoid delta
    # maps to ~1e-2-level gate differences, hence the looser-than-f32 bounds below.
    ATOL, RTOL = 5e-2, 2e-2

    # Path 1: fused single-pass kernel (default dispatch at this size).
    y_fused = jax.block_until_ready(scse_forward(x, *params))
    assert y_fused.shape == (N, C, H, W)
    assert jnp.allclose(y_fused, y_ref, atol=ATOL, rtol=RTOL), "fused kernel mismatch vs reference"

    # Path 2: two-pass tiled kernel (forced via tiny budget; exercises grid=(N, cdiv(HW,128))).
    y_tiled = jax.block_until_ready(scse_forward(x, *params, vmem_budget_bytes=1))
    assert jnp.allclose(y_tiled, y_ref, atol=ATOL, rtol=RTOL), "tiled kernel mismatch vs reference"

    # Path 3: bf16 activations stream through the fused path (HBM-bound op -> ~2x wall-clock).
    xb = x.astype(jnp.bfloat16)
    y_bf16 = jax.block_until_ready(scse_forward(xb, *params))
    assert y_bf16.dtype == jnp.bfloat16
    y_ref_b = scse_reference(xb.astype(jnp.float32), *params)
    assert jnp.allclose(y_bf16.astype(jnp.float32), y_ref_b, atol=1.5e-1, rtol=5e-2), \
        "bf16 kernel mismatch vs reference"

    print("KERNEL_OK")
</pallas_src>

<mosaic_0001>
module attributes {stable_mosaic.version = 11 : i64} {
  func.func @_scse_fused_kernel(%arg0: i32, %arg1: memref<1x32x256xf32, #tpu.memory_space<vmem>>, %arg2: memref<2x32xf32, #tpu.memory_space<vmem>>, %arg3: memref<2x1xf32, #tpu.memory_space<vmem>>, %arg4: memref<32x2xf32, #tpu.memory_space<vmem>>, %arg5: memref<32x1xf32, #tpu.memory_space<vmem>>, %arg6: memref<1x32xf32, #tpu.memory_space<vmem>>, %arg7: memref<1x1xf32, #tpu.memory_space<vmem>>, %arg8: memref<1x32x256xf32, #tpu.memory_space<vmem>>) attributes {dimension_semantics = [#tpu.dimension_semantics<parallel>], iteration_bounds = array<i64: 2>, scalar_prefetch = 0 : i64, scratch_operands = 0 : i64, tpu.core_type = #tpu.core_type<tc>, window_params = [{transform_indices = @transform_0, window_bounds = array<i64: 1, 32, 256>}, {pipeline_mode = #tpu.pipeline_mode<synchronous>, transform_indices = @transform_1, window_bounds = array<i64: 2, 32>}, {pipeline_mode = #tpu.pipeline_mode<synchronous>, transform_indices = @transform_2, window_bounds = array<i64: 2, 1>}, {pipeline_mode = #tpu.pipeline_mode<synchronous>, transform_indices = @transform_3, window_bounds = array<i64: 32, 2>}, {pipeline_mode = #tpu.pipeline_mode<synchronous>, transform_indices = @transform_4, window_bounds = array<i64: 32, 1>}, {pipeline_mode = #tpu.pipeline_mode<synchronous>, transform_indices = @transform_5, window_bounds = array<i64: 1, 32>}, {pipeline_mode = #tpu.pipeline_mode<synchronous>, transform_indices = @transform_6, window_bounds = array<i64: 1, 1>}, {transform_indices = @transform_7, window_bounds = array<i64: 1, 32, 256>}]} {
    %c0 = arith.constant 0 : index
    %c0_0 = arith.constant 0 : index
    %c0_1 = arith.constant 0 : index
    %0 = vector.load %arg1[%c0, %c0_0, %c0_1] : memref<1x32x256xf32, #tpu.memory_space<vmem>>, vector<1x32x256xf32>
    %1 = vector.shape_cast %0 : vector<1x32x256xf32> to vector<32x256xf32>
    %cst = arith.constant dense<0.000000e+00> : vector<32xf32>
    %2 = vector.multi_reduction <add>, %1, %cst [1] : vector<32x256xf32> to vector<32xf32>
    %3 = vector.shape_cast %2 : vector<32xf32> to vector<32x1xf32>
    %cst_2 = arith.constant 2.560000e+02 : f32
    %4 = vector.broadcast %cst_2 : f32 to vector<32x1xf32>
    %5 = arith.divf %3, %4 : vector<32x1xf32>
    %c0_3 = arith.constant 0 : index
    %c0_4 = arith.constant 0 : index
    %6 = vector.load %arg2[%c0_3, %c0_4] : memref<2x32xf32, #tpu.memory_space<vmem>>, vector<2x32xf32>
    %cst_5 = arith.constant dense<0.000000e+00> : vector<2x1xf32>
    %7 = tpu.matmul %6, %5, %cst_5 {dimension_numbers = #tpu.dot_dimension_numbers<[1], [0], [0], [1], [0, 0, 1, 1], [], []>} : vector<2x32xf32>, vector<32x1xf32>, vector<2x1xf32> -> vector<2x1xf32>
    %c0_6 = arith.constant 0 : index
    %c0_7 = arith.constant 0 : index
    %8 = vector.load %arg3[%c0_6, %c0_7] : memref<2x1xf32, #tpu.memory_space<vmem>>, vector<2x1xf32>
    %9 = arith.addf %7, %8 : vector<2x1xf32>
    %cst_8 = arith.constant 0.000000e+00 : f32
    %10 = vector.broadcast %cst_8 : f32 to vector<2x1xf32>
    %11 = arith.maximumf %9, %10 : vector<2x1xf32>
    %c0_9 = arith.constant 0 : index
    %c0_10 = arith.constant 0 : index
    %12 = vector.load %arg4[%c0_9, %c0_10] : memref<32x2xf32, #tpu.memory_space<vmem>>, vector<32x2xf32>
    %cst_11 = arith.constant dense<0.000000e+00> : vector<32x1xf32>
    %13 = tpu.matmul %12, %11, %cst_11 {dimension_numbers = #tpu.dot_dimension_numbers<[1], [0], [0], [1], [0, 0, 1, 1], [], []>} : vector<32x2xf32>, vector<2x1xf32>, vector<32x1xf32> -> vector<32x1xf32>
    %c0_12 = arith.constant 0 : index
    %c0_13 = arith.constant 0 : index
    %14 = vector.load %arg5[%c0_12, %c0_13] : memref<32x1xf32, #tpu.memory_space<vmem>>, vector<32x1xf32>
    %15 = arith.addf %13, %14 : vector<32x1xf32>
    %16 = arith.negf %15 : vector<32x1xf32>
    %17 = math.exp %16 : vector<32x1xf32>
    %cst_14 = arith.constant 1.000000e+00 : f32
    %18 = vector.broadcast %cst_14 : f32 to vector<32x1xf32>
    %19 = arith.addf %18, %17 : vector<32x1xf32>
    %20 = arith.divf %18, %19 : vector<32x1xf32>
    %c0_15 = arith.constant 0 : index
    %c0_16 = arith.constant 0 : index
    %21 = vector.load %arg6[%c0_15, %c0_16] : memref<1x32xf32, #tpu.memory_space<vmem>>, vector<1x32xf32>
    %cst_17 = arith.constant dense<0.000000e+00> : vector<1x256xf32>
    %22 = tpu.matmul %21, %1, %cst_17 {dimension_numbers = #tpu.dot_dimension_numbers<[1], [0], [0], [1], [0, 0, 1, 1], [], []>} : vector<1x32xf32>, vector<32x256xf32>, vector<1x256xf32> -> vector<1x256xf32>
    %c0_18 = arith.constant 0 : index
    %c0_19 = arith.constant 0 : index
    %23 = vector.load %arg7[%c0_18, %c0_19] : memref<1x1xf32, #tpu.memory_space<vmem>>, vector<1x1xf32>
    %24 = vector.broadcast %23 : vector<1x1xf32> to vector<1x256xf32>
    %25 = arith.addf %22, %24 : vector<1x256xf32>
    %26 = arith.negf %25 : vector<1x256xf32>
    %27 = math.exp %26 : vector<1x256xf32>
    %cst_20 = arith.constant 1.000000e+00 : f32
    %28 = vector.broadcast %cst_20 : f32 to vector<1x256xf32>
    %29 = arith.addf %28, %27 : vector<1x256xf32>
    %30 = arith.divf %28, %29 : vector<1x256xf32>
    %31 = vector.broadcast %20 : vector<32x1xf32> to vector<32x256xf32>
    %32 = vector.broadcast %30 : vector<1x256xf32> to vector<32x256xf32>
    %33 = arith.addf %31, %32 : vector<32x256xf32>
    %34 = arith.mulf %1, %33 : vector<32x256xf32>
    %c0_21 = arith.constant 0 : index
    %c0_22 = arith.constant 0 : index
    %c0_23 = arith.constant 0 : index
    %35 = vector.load %arg8[%c0_21, %c0_22, %c0_23] : memref<1x32x256xf32, #tpu.memory_space<vmem>>, vector<1x32x256xf32>
    %36 = vector.shape_cast %35 : vector<1x32x256xf32> to vector<32x256xf32>
    %37 = vector.shape_cast %34 : vector<32x256xf32> to vector<1x32x256xf32>
    tpu.vector_store %arg8[%c0_21, %c0_22, %c0_23], %37 {strides = array<i32>} : memref<1x32x256xf32, #tpu.memory_space<vmem>>, vector<1x32x256xf32>,
    return
  }
  func.func @transform_0(%arg0: i32) -> (i32, i32, i32) {
    %c0_i32 = arith.constant 0 : i32
    %c0_i32_0 = arith.constant 0 : i32
    %c0_i32_1 = arith.constant 0 : i32
    return %arg0, %c0_i32, %c0_i32_0 : i32, i32, i32
  }
  func.func @transform_1(%arg0: i32) -> (i32, i32) {
    %c0_i32 = arith.constant 0 : i32
    %c0_i32_0 = arith.constant 0 : i32
    %c0_i32_1 = arith.constant 0 : i32
    return %c0_i32, %c0_i32_0 : i32, i32
  }
  func.func @transform_2(%arg0: i32) -> (i32, i32) {
    %c0_i32 = arith.constant 0 : i32
    %c0_i32_0 = arith.constant 0 : i32
    %c0_i32_1 = arith.constant 0 : i32
    return %c0_i32, %c0_i32_0 : i32, i32
  }
  func.func @transform_3(%arg0: i32) -> (i32, i32) {
    %c0_i32 = arith.constant 0 : i32
    %c0_i32_0 = arith.constant 0 : i32
    %c0_i32_1 = arith.constant 0 : i32
    return %c0_i32, %c0_i32_0 : i32, i32
  }
  func.func @transform_4(%arg0: i32) -> (i32, i32) {
    %c0_i32 = arith.constant 0 : i32
    %c0_i32_0 = arith.constant 0 : i32
    %c0_i32_1 = arith.constant 0 : i32
    return %c0_i32, %c0_i32_0 : i32, i32
  }
  func.func @transform_5(%arg0: i32) -> (i32, i32) {
    %c0_i32 = arith.constant 0 : i32
    %c0_i32_0 = arith.constant 0 : i32
    %c0_i32_1 = arith.constant 0 : i32
    return %c0_i32, %c0_i32_0 : i32, i32
  }
  func.func @transform_6(%arg0: i32) -> (i32, i32) {
    %c0_i32 = arith.constant 0 : i32
    %c0_i32_0 = arith.constant 0 : i32
    %c0_i32_1 = arith.constant 0 : i32
    return %c0_i32, %c0_i32_0 : i32, i32
  }
  func.func @transform_7(%arg0: i32) -> (i32, i32, i32) {
    %c0_i32 = arith.constant 0 : i32
    %c0_i32_0 = arith.constant 0 : i32
    %c0_i32_1 = arith.constant 0 : i32
    return %arg0, %c0_i32, %c0_i32_0 : i32, i32, i32
  }
}

</mosaic_0001>

<llo_original>
// kernel: tpu_custom_call.1
$region0: #{tpu_custom_call.1}
  #allocation0 [shape = 'u32[]', space=smem, size = 0x4, offset = 0x4, fixed_abs, tag = 'smem constant byte address 0x4 - core index']
  #allocation1 [shape = 'u32[144,128]{1,0:T(1,128)}', space=vmem, size = 0x12000, scoped, tag = 'internal scratch']
  #allocation2 [shape = 'f32[1,1]{1,0:T(1,128)S(1)}', space=vmem, size = 0x200, scoped, tag = 'scoped memory for tpu_custom_call.1']
  %s0 = inlined_call_operand.hbm [shape: f32[2,32,256], index: 0, kind: input, shape index: {}]
  %s1 = inlined_call_operand.vmem [shape: f32[2,32], index: 1, kind: input, shape index: {}]
  %s2 = inlined_call_operand.vmem [shape: f32[2,1], index: 2, kind: input, shape index: {}]
  %s3 = inlined_call_operand.vmem [shape: f32[32,2], index: 3, kind: input, shape index: {}]
  %s4 = inlined_call_operand.vmem [shape: f32[32,1], index: 4, kind: input, shape index: {}]
  %s5 = inlined_call_operand.vmem [shape: f32[1,32], index: 5, kind: input, shape index: {}]
  %s6 = inlined_call_operand.<no memory space> [shape: f32[1,1], index: 6, kind: input, shape index: {}]
  %s7 = inlined_call_operand.hbm [shape: f32[2,32,256], index: 7, kind: output, shape index: {}]
  %s8 = sld [smem:[#allocation0]]
  $region65: #{tpu_custom_call.1} parent=0
    _
  %s10 = ssub.s32 1, %s8
  %s11 = scalar_select 0, %s10, %s8
  %v12 = vstv %s6
  %13 = vst [vmem:[#allocation2] sm:$0x1] %v12
  $region1: #{tpu_custom_call.1} parent=0
    #allocation3 [shape = 'u8[65536]{0}', space=vmem, size = 0x10000, scoped, tag = 'input window, operand 0']
    #allocation4 [shape = 's32[2]{0}', space=sflag, size = 0x8, scoped, tag = 'scoped memory for tpu_custom_call.1']
    #allocation5 [shape = 's32[2]{0}', space=sflag, size = 0x8, scoped, tag = 'scoped memory for tpu_custom_call.1']
    #allocation6 [shape = 'u8[65536]{0}', space=vmem, size = 0x10000, scoped, tag = 'output window, operand 0']
    %14 = vsyncpa [#allocation4], 0
    %s15 = scalar_lea.sflag [#allocation4], 1
    %16 = vsyncpa %s15, 0
    %17 = vsyncpa [#allocation5], 0
    %s18 = scalar_lea.sflag [#allocation5], 1
    %19 = vsyncpa %s18, 0
    loop: start=0, step=1, limit=4
    $region2: #{tpu_custom_call.1} parent=1 // loop_pre_header
      _
    $region3: #{tpu_custom_call.1} parent=1 // loop_header
      %s21 = sphi 0, %s25
      %p22 = scmp.ge.s32.totalorder %s21, 4
      %s31 = sphi 0, %s33
      %s34 = sphi 0, %s31
      %s35 = sphi 0, %s34
      %s51 = sphi 0, %s35
      %s55 = sphi 0, %s55
      %s57 = sphi 0, %s55
      %s58 = sphi 0, %s57
      %s72 = sphi 0, %s58
      %s76 = sphi 0, %s76
      %s78 = sphi 0, %s76
      %s79 = sphi 0, %s78
      %s93 = sphi 0, %s79
      %s97 = sphi 0, %s97
      %s99 = sphi 0, %s97
      %s100 = sphi 0, %s99
      %s114 = sphi 0, %s100
      %s118 = sphi 0, %s118
      %s120 = sphi 0, %s118
      %s121 = sphi 0, %s120
      %s135 = sphi 0, %s121
      %s139 = sphi 0, %s139
      %s141 = sphi 0, %s139
      %s142 = sphi 0, %s141
      %s156 = sphi 0, %s142
      %s160 = sphi 0, %s160
      %s162 = sphi 0, %s160
      %s163 = sphi 0, %s162
      %s177 = sphi 0, %s163
      %s183 = sphi 0, %s185
      %s186 = sphi 0, %s183
      %s187 = sphi 0, %s186
      %s203 = sphi 0, %s187
    $region4: #{tpu_custom_call.1} parent=1 // loop_header_branch
      %24 = sbr.rel (%p22) target = $region8
    $region5: #{tpu_custom_call.1} parent=1 // loop_body
      %s26 = ssub.s32 %s21, 1
      %s27 = ssub.s32 %s21, 2
      %s28 = sadd.s32 %s21, 1
      %s29 = ssub.s32 %s21, %s28
      %p30 = scmp.eq.s32.totalorder %s29, 0
      %s32 = sadd.s32 %s31, 1
      %s33 = scalar_select %p30, %s31, %s32
      %p36 = pneg %p30
      %p37 = scmp.eq.s32.totalorder %s21, 1
      %p38 = por %p36, %p37
      %p39 = scmp.ne.s32.totalorder %s31, %s34
      %p40 = scmp.eq.s32.totalorder %s21, 0
      %p41 = por %p39, %p40
      %p42 = scmp.ne.s32.totalorder %s31, %s34
      %p43 = scmp.eq.s32.totalorder %s26, 1
      %p44 = por %p42, %p43
      %p45 = scmp.ne.s32.totalorder %s34, %s35
      %p46 = scmp.eq.s32.totalorder %s26, 0
      %p47 = por %p45, %p46
      %p48 = scmp.ne.s32.totalorder %s34, %s35
      %p49 = scmp.eq.s32.totalorder %s27, 1
      %p50 = por %p48, %p49
      %p52 = scmp.ne.s32.totalorder %s35, %s51
      %p53 = scmp.eq.s32.totalorder %s27, 0
      %p54 = por %p52, %p53
      %s56 = sadd.s32 %s55, 1
      %p59 = scmp.eq.s32.totalorder %s21, 1
      %p60 = scmp.ne.s32.totalorder %s55, %s57
      %p61 = scmp.eq.s32.totalorder %s21, 0
      %p62 = por %p60, %p61
      %p63 = scmp.ne.s32.totalorder %s55, %s57
      %p64 = scmp.eq.s32.totalorder %s26, 1
      %p65 = por %p63, %p64
      %p66 = scmp.ne.s32.totalorder %s57, %s58
      %p67 = scmp.eq.s32.totalorder %s26, 0
      %p68 = por %p66, %p67
      %p69 = scmp.ne.s32.totalorder %s57, %s58
      %p70 = scmp.eq.s32.totalorder %s27, 1
      %p71 = por %p69, %p70
      %p73 = scmp.ne.s32.totalorder %s58, %s72
      %p74 = scmp.eq.s32.totalorder %s27, 0
      %p75 = por %p73, %p74
      %s77 = sadd.s32 %s76, 1
      %p80 = scmp.eq.s32.totalorder %s21, 1
      %p81 = scmp.ne.s32.totalorder %s76, %s78
      %p82 = scmp.eq.s32.totalorder %s21, 0
      %p83 = por %p81, %p82
      %p84 = scmp.ne.s32.totalorder %s76, %s78
      %p85 = scmp.eq.s32.totalorder %s26, 1
      %p86 = por %p84, %p85
      %p87 = scmp.ne.s32.totalorder %s78, %s79
      %p88 = scmp.eq.s32.totalorder %s26, 0
      %p89 = por %p87, %p88
      %p90 = scmp.ne.s32.totalorder %s78, %s79
      %p91 = scmp.eq.s32.totalorder %s27, 1
      %p92 = por %p90, %p91
      %p94 = scmp.ne.s32.totalorder %s79, %s93
      %p95 = scmp.eq.s32.totalorder %s27, 0
      %p96 = por %p94, %p95
      %s98 = sadd.s32 %s97, 1
      %p101 = scmp.eq.s32.totalorder %s21, 1
      %p102 = scmp.ne.s32.totalorder %s97, %s99
      %p103 = scmp.eq.s32.totalorder %s21, 0
      %p104 = por %p102, %p103
      %p105 = scmp.ne.s32.totalorder %s97, %s99
      %p106 = scmp.eq.s32.totalorder %s26, 1
      %p107 = por %p105, %p106
      %p108 = scmp.ne.s32.totalorder %s99, %s100
      %p109 = scmp.eq.s32.totalorder %s26, 0
      %p110 = por %p108, %p109
      %p111 = scmp.ne.s32.totalorder %s99, %s100
      %p112 = scmp.eq.s32.totalorder %s27, 1
      %p113 = por %p111, %p112
      %p115 = scmp.ne.s32.totalorder %s100, %s114
      %p116 = scmp.eq.s32.totalorder %s27, 0
      %p117 = por %p115, %p116
      %s119 = sadd.s32 %s118, 1
      %p122 = scmp.eq.s32.totalorder %s21, 1
      %p123 = scmp.ne.s32.totalorder %s118, %s120
      %p124 = scmp.eq.s32.totalorder %s21, 0
      %p125 = por %p123, %p124
      %p126 = scmp.ne.s32.totalorder %s118, %s120
      %p127 = scmp.eq.s32.totalorder %s26, 1
      %p128 = por %p126, %p127
      %p129 = scmp.ne.s32.totalorder %s120, %s121
      %p130 = scmp.eq.s32.totalorder %s26, 0
      %p131 = por %p129, %p130
      %p132 = scmp.ne.s32.totalorder %s120, %s121
      %p133 = scmp.eq.s32.totalorder %s27, 1
      %p134 = por %p132, %p133
      %p136 = scmp.ne.s32.totalorder %s121, %s135
      %p137 = scmp.eq.s32.totalorder %s27, 0
      %p138 = por %p136, %p137
      %s140 = sadd.s32 %s139, 1
      %p143 = scmp.eq.s32.totalorder %s21, 1
      %p144 = scmp.ne.s32.totalorder %s139, %s141
      %p145 = scmp.eq.s32.totalorder %s21, 0
      %p146 = por %p144, %p145
      %p147 = scmp.ne.s32.totalorder %s139, %s141
      %p148 = scmp.eq.s32.totalorder %s26, 1
      %p149 = por %p147, %p148
      %p150 = scmp.ne.s32.totalorder %s141, %s142
      %p151 = scmp.eq.s32.totalorder %s26, 0
      %p152 = por %p150, %p151
      %p153 = scmp.ne.s32.totalorder %s141, %s142
      %p154 = scmp.eq.s32.totalorder %s27, 1
      %p155 = por %p153, %p154
      %p157 = scmp.ne.s32.totalorder %s142, %s156
      %p158 = scmp.eq.s32.totalorder %s27, 0
      %p159 = por %p157, %p158
      %s161 = sadd.s32 %s160, 1
      %p164 = scmp.eq.s32.totalorder %s21, 1
      %p165 = scmp.ne.s32.totalorder %s160, %s162
      %p166 = scmp.eq.s32.totalorder %s21, 0
      %p167 = por %p165, %p166
      %p168 = scmp.ne.s32.totalorder %s160, %s162
      %p169 = scmp.eq.s32.totalorder %s26, 1
      %p170 = por %p168, %p169
      %p171 = scmp.ne.s32.totalorder %s162, %s163
      %p172 = scmp.eq.s32.totalorder %s26, 0
      %p173 = por %p171, %p172
      %p174 = scmp.ne.s32.totalorder %s162, %s163
      %p175 = scmp.eq.s32.totalorder %s27, 1
      %p176 = por %p174, %p175
      %p178 = scmp.ne.s32.totalorder %s163, %s177
      %p179 = scmp.eq.s32.totalorder %s27, 0
      %p180 = por %p178, %p179
      %s181 = ssub.s32 %s21, %s28
      %p182 = scmp.eq.s32.totalorder %s181, 0
      %s184 = sadd.s32 %s183, 1
      %s185 = scalar_select %p182, %s183, %s184
      %p188 = pneg %p182
      %p189 = scmp.eq.s32.totalorder %s21, 1
      %p190 = por %p188, %p189
      %p191 = scmp.ne.s32.totalorder %s183, %s186
      %p192 = scmp.eq.s32.totalorder %s21, 0
      %p193 = por %p191, %p192
      %p194 = scmp.ne.s32.totalorder %s183, %s186
      %p195 = scmp.eq.s32.totalorder %s26, 1
      %p196 = por %p194, %p195
      %p197 = scmp.ne.s32.totalorder %s186, %s187
      %p198 = scmp.eq.s32.totalorder %s26, 0
      %p199 = por %p197, %p198
      %p200 = scmp.ne.s32.totalorder %s186, %s187
      %p201 = scmp.eq.s32.totalorder %s27, 1
      %p202 = por %p200, %p201
      %p204 = scmp.ne.s32.totalorder %s187, %s203
      %p205 = scmp.eq.s32.totalorder %s27, 0
      %p206 = por %p204, %p205
      %p207 = scmp.le.s32.totalorder 1, %s21
      %p208 = scmp.lt.s32.totalorder %s21, 3
      %p209 = pnand %p207, %p208
      %p210 = pneg %p209
      // Predicated region
      $region9: #{tpu_custom_call.1} parent=5 // pred_check
        _
      $region10: #{tpu_custom_call.1} parent=5 // pred_check_branch
        %212 = sbr.rel (%p209) target = $region12
      $region11: #{tpu_custom_call.1} parent=5 // pred_region
        %s213 = ssub.s32 %s21, 1
        // Predicated region
        $region13: #{tpu_custom_call.1} parent=11 // pred_check
          %p214 = pneg %p68
        $region14: #{tpu_custom_call.1} parent=11 // pred_check_branch
          %216 = sbr.rel (%p214) target = $region16
        $region15: #{tpu_custom_call.1} parent=11 // pred_region
          _
        $region16: #{tpu_custom_call.1} parent=11 // pred_fallthru
          _
        // Predicated region
        $region17: #{tpu_custom_call.1} parent=11 // pred_check
          %p217 = pneg %p89
        $region18: #{tpu_custom_call.1} parent=11 // pred_check_branch
          %219 = sbr.rel (%p217) target = $region20
        $region19: #{tpu_custom_call.1} parent=11 // pred_region
          _
        $region20: #{tpu_custom_call.1} parent=11 // pred_fallthru
          _
        // Predicated region
        $region21: #{tpu_custom_call.1} parent=11 // pred_check
          %p220 = pneg %p110
        $region22: #{tpu_custom_call.1} parent=11 // pred_check_branch
          %222 = sbr.rel (%p220) target = $region24
        $region23: #{tpu_custom_call.1} parent=11 // pred_region
          _
        $region24: #{tpu_custom_call.1} parent=11 // pred_fallthru
          _
        // Predicated region
        $region25: #{tpu_custom_call.1} parent=11 // pred_check
          %p223 = pneg %p131
        $region26: #{tpu_custom_call.1} parent=11 // pred_check_branch
          %225 = sbr.rel (%p223) target = $region28
        $region27: #{tpu_custom_call.1} parent=11 // pred_region
          _
        $region28: #{tpu_custom_call.1} parent=11 // pred_fallthru
          _
        // Predicated region
        $region29: #{tpu_custom_call.1} parent=11 // pred_check
          %p226 = pneg %p152
        $region30: #{tpu_custom_call.1} parent=11 // pred_check_branch
          %228 = sbr.rel (%p226) target = $region32
        $region31: #{tpu_custom_call.1} parent=11 // pred_region
          _
        $region32: #{tpu_custom_call.1} parent=11 // pred_fallthru
          _
        // Predicated region
        $region33: #{tpu_custom_call.1} parent=11 // pred_check
          %p229 = pneg %p173
        $region34: #{tpu_custom_call.1} parent=11 // pred_check_branch
          %231 = sbr.rel (%p229) target = $region36
        $region35: #{tpu_custom_call.1} parent=11 // pred_region
          _
        $region36: #{tpu_custom_call.1} parent=11 // pred_fallthru
          _
      $region12: #{tpu_custom_call.1} parent=5 // pred_fallthru
        _
      %p232 = scmp.lt.s32.totalorder %s21, 2
      // Predicated region
      $region37: #{tpu_custom_call.1} parent=5 // pred_check
        %p233 = pneg %p232
      $region38: #{tpu_custom_call.1} parent=5 // pred_check_branch
        %235 = sbr.rel (%p233) target = $region40
      $region39: #{tpu_custom_call.1} parent=5 // pred_region
        // Predicated region
        $region41: #{tpu_custom_call.1} parent=39 // pred_check
          %p236 = pneg %p41
        $region42: #{tpu_custom_call.1} parent=39 // pred_check_branch
          %238 = sbr.rel (%p236) target = $region44
        $region43: #{tpu_custom_call.1} parent=39 // pred_region
          %s239 = sand.u32 %s31, 1
          %s240 = scalar_lea.sflag [#allocation4], %s239
          %s241 = sand.u32 %s31, 1
          %s242 = smul.addr %s241, 64
          %s243 = scalar_lea.vmem [#allocation3], %s242
          %s245 = ssub.s32 1024, 1024
          %246 = vsyncadd %s240, %s245
          %s247 = smul.addr %s21, 8
          %s248 = smul.addr %s247, 128
          %s249 = scalar_lea.hbm %s0, %s248
          %s250 = sshll.u32 %s243, 4
          %s251 = int_to_ptr.vmem [resolvable:$true] %s250
          %256 = dma.hbm_to_vmem [thread:$0]  %s249, 1024, %s251, %s240, 256, 256, 16
        $region44: #{tpu_custom_call.1} parent=39 // pred_fallthru
          _
      $region40: #{tpu_custom_call.1} parent=5 // pred_fallthru
        _
      %p257 = scmp.le.s32.totalorder 1, %s21
      %p258 = scmp.lt.s32.totalorder %s21, 3
      %p259 = pnand %p257, %p258
      %p260 = pneg %p259
      // Predicated region
      $region45: #{tpu_custom_call.1} parent=5 // pred_check
        _
      $region46: #{tpu_custom_call.1} parent=5 // pred_check_branch
        %262 = sbr.rel (%p259) target = $region48
      $region47: #{tpu_custom_call.1} parent=5 // pred_region
        %s263 = ssub.s32 %s21, 1
        %s264 = sand.u32 %s34, 1
        %s265 = scalar_lea.sflag [#allocation4], %s264
        %s266 = sand.u32 %s34, 1
        %s267 = smul.addr %s266, 64
        %s268 = scalar_lea.vmem [#allocation3], %s267
        // Predicated region
        $region49: #{tpu_custom_call.1} parent=47 // pred_check
          %p269 = pneg %p47
        $region50: #{tpu_custom_call.1} parent=47 // pred_check_branch
          %271 = sbr.rel (%p269) target = $region52
        $region51: #{tpu_custom_call.1} parent=47 // pred_region
          %272 = dma.done %s265, 1024
        $region52: #{tpu_custom_call.1} parent=47 // pred_fallthru
          _
        %s273 = sand.u32 %s34, 1
        %s274 = scalar_lea.sflag [#allocation4], %s273
        %s275 = sand.u32 %s34, 1
        %s276 = smul.addr %s275, 64
        %s277 = scalar_lea.vmem [#allocation3], %s276
        %p278 = pneg %p47
        %p279 = pneg %p44
        %p280 = pneg %p68
        %p281 = pneg %p65
        %p282 = pneg %p89
        %p283 = pneg %p86
        %p284 = pneg %p110
        %p285 = pneg %p107
        %p286 = pneg %p131
        %p287 = pneg %p128
        %p288 = pneg %p152
        %p289 = pneg %p149
        %p290 = pneg %p173
        %p291 = pneg %p170
        %p292 = pneg %p199
        %p293 = pneg %p196
        %s294 = sand.u32 %s186, 1
        %s295 = scalar_lea.sflag [#allocation5], %s294
        %s296 = sand.u32 %s186, 1
        %s297 = smul.addr %s296, 64
        %s298 = scalar_lea.vmem [#allocation6], %s297
        %v299 = vld [vmem:[%s268] sm:$0xff]
        %v300 = vld [vmem:[%s268 + $0x8] sm:$0xff]
        %v301 = vld [vmem:[%s268 + $0x10] sm:$0xff]
        %v302 = vld [vmem:[%s268 + $0x18] sm:$0xff]
        %v303 = vld [vmem:[%s268 + $0x20] sm:$0xff]
        %v304 = vld [vmem:[%s268 + $0x28] sm:$0xff]
        %v305 = vld [vmem:[%s268 + $0x30] sm:$0xff]
        %v306 = vld [vmem:[%s268 + $0x38] sm:$0xff]
        %v307 = vadd.f32 %v299, %v300
        %308 = vadd.xlane.f32.xlu0 %v307
        %v309 = vpop.xlane.xlu0 %308
        %v310 = vadd.f32 %v301, %v302
        %311 = vadd.xlane.f32.xlu0 %v310
        %v312 = vpop.xlane.xlu0 %311
        %v313 = vadd.f32 %v303, %v304
        %314 = vadd.xlane.f32.xlu0 %v313
        %v315 = vpop.xlane.xlu0 %314
        %v316 = vadd.f32 %v305, %v306
        %317 = vadd.xlane.f32.xlu0 %v316
        %v318 = vpop.xlane.xlu0 %317
        %v319 = vrcp.pop 256.0
        %v320 = vmul.f32 %v309, %v319
        %v321 = vmul.f32 %v312, %v319
        %v322 = vmul.f32 %v315, %v319
        %v323 = vmul.f32 %v318, %v319
        %v324 = vld [vmem:[%s1] sm:$0x3]
        %v325 = vld [vmem:[%s2] sm:$0x3]
        %vm326 = vcmask 261120
        %v328 = vsel %vm326, %v324, 0
        %330 = vmatprep.subr.mxu0 0.0
        %331 = vmatpush1.msra.mxu0 %v320
        %332 = vmatprep.subr.mxu0 0.0
        %333 = vmatpush1.msra.mxu0 %v321
        %334 = vmatprep.subr.mxu0 0.0
        %335 = vmatpush1.msra.mxu0 %v322
        %336 = vmatprep.subr.mxu0 0.0
        %337 = vmatpush1.msra.mxu0 %v323
        %338 = vmatprep.subr.mxu0 0.0
        %339 = vmatpush1.msra.mxu0 0.0
        %340 = vmatprep.subr.mxu0 0.0
        %341 = vmatpush1.msra.mxu0 0.0
        %342 = vmatprep.subr.mxu0 0.0
        %343 = vmatpush1.msra.mxu0 0.0
        %344 = vmatprep.subr.mxu0 0.0
        %345 = vmatpush1.msra.mxu0 0.0
        %346 = vmatprep.subr.mxu0 0.0
        %347 = vmatpush1.msra.mxu0 0.0
        %348 = vmatprep.subr.mxu0 0.0
        %349 = vmatpush1.msra.mxu0 0.0
        %350 = vmatprep.subr.mxu0 0.0
        %351 = vmatpush1.msra.mxu0 0.0
        %352 = vmatprep.subr.mxu0 0.0
        %353 = vmatpush1.msra.mxu0 0.0
        %354 = vmatprep.subr.mxu0 0.0
        %355 = vmatpush1.msra.mxu0 0.0
        %356 = vmatprep.subr.mxu0 0.0
        %357 = vmatpush1.msra.mxu0 0.0
        %358 = vmatprep.subr.mxu0 0.0
        %359 = vmatpush1.msra.mxu0 0.0
        %360 = vmatprep.subr.mxu0 0.0
        %361 = vmatpush1.msra.mxu0 0.0
        %362 = vmatprep.subr.mxu0 0.0
        %363 = vmatpush1.msra.mxu0 0.0
        %364 = vmatprep.subr.mxu0 0.0
        %365 = vmatpush1.msra.mxu0 0.0
        %366 = vmatprep.subr.mxu0 0.0
        %367 = vmatpush1.msra.mxu0 0.0
        %368 = vmatprep.subr.mxu0 0.0
        %369 = vmatpush1.msra.mxu0 0.0
        %370 = vmatprep.subr.mxu0 0.0
        %371 = vmatpush1.msra.mxu0 0.0
        %372 = vmatprep.subr.mxu0 0.0
        %373 = vmatpush1.msra.mxu0 0.0
        %374 = vmatprep.subr.mxu0 0.0
        %375 = vmatpush1.msra.mxu0 0.0
        %376 = vmatprep.subr.mxu0 0.0
        %377 = vmatpush1.msra.mxu0 0.0
        %378 = vmatprep.subr.mxu0 0.0
        %379 = vmatpush1.msra.mxu0 0.0
        %380 = vmatprep.subr.mxu0 0.0
        %381 = vmatpush1.msra.mxu0 0.0
        %382 = vmatprep.subr.mxu0 0.0
        %383 = vmatpush1.msra.mxu0 0.0
        %384 = vmatprep.subr.mxu0 0.0
        %385 = vmatpush1.msra.mxu0 0.0
        %386 = vmatprep.subr.mxu0 0.0
        %387 = vmatpush1.msra.mxu0 0.0
        %388 = vmatprep.subr.mxu0 0.0
        %389 = vmatpush1.msra.mxu0 0.0
        %390 = vmatprep.subr.mxu0 0.0
        %391 = vmatpush1.msra.mxu0 0.0
        %392 = vmatprep.subr.mxu0 0.0
        %393 = vmatpush1.msra.mxu0 0.0
        %394 = vmatprep.mubr.f32.mxu0 0.0
        %395 = vmatmul.mubr.f32.gmra.mrb[0].mxu0 %v328
        %v396 = vpop.f32.mrb[0].mxu0
        %v397 = vadd.f32 %v325, %v396
        %v398 = vpop.f32.mrb[0].mxu0
        %399 = vdwg.mxu0
        %v400 = vmax.f32 %v397, 0.0
        %v401 = vld [vmem:[%s3] sm:$0xff]
        %v402 = vld [vmem:[%s3 + $0x8] sm:$0xff]
        %v403 = vld [vmem:[%s3 + $0x10] sm:$0xff]
        %v404 = vld [vmem:[%s3 + $0x18] sm:$0xff]
        %v405 = vld [vmem:[%s4] sm:$0xff]
        %v406 = vld [vmem:[%s4 + $0x8] sm:$0xff]
        %v407 = vld [vmem:[%s4 + $0x10] sm:$0xff]
        %v408 = vld [vmem:[%s4 + $0x18] sm:$0xff]
        %vm409 = vcmask 15360
        %v411 = vsel %vm409, %v401, 0
        %v414 = vsel %vm409, %v402, 0
        %v417 = vsel %vm409, %v403, 0
        %v420 = vsel %vm409, %v404, 0
        %vm422 = vcmask 1041408
        %v424 = vsel %vm422, %v400, 0
        %426 = vmatprep.subr.mxu0 0.0
        %427 = vmatpush1.msra.mxu0 %v424
        %428 = vmatprep.subr.mxu0 0.0
        %429 = vmatpush1.msra.mxu0 0.0
        %430 = vmatprep.subr.mxu0 0.0
        %431 = vmatpush1.msra.mxu0 0.0
        %432 = vmatprep.subr.mxu0 0.0
        %433 = vmatpush1.msra.mxu0 0.0
        %434 = vmatprep.subr.mxu0 0.0
        %435 = vmatpush1.msra.mxu0 0.0
        %436 = vmatprep.subr.mxu0 0.0
        %437 = vmatpush1.msra.mxu0 0.0
        %438 = vmatprep.subr.mxu0 0.0
        %439 = vmatpush1.msra.mxu0 0.0
        %440 = vmatprep.subr.mxu0 0.0
        %441 = vmatpush1.msra.mxu0 0.0
        %442 = vmatprep.subr.mxu0 0.0
        %443 = vmatpush1.msra.mxu0 0.0
        %444 = vmatprep.subr.mxu0 0.0
        %445 = vmatpush1.msra.mxu0 0.0
        %446 = vmatprep.subr.mxu0 0.0
        %447 = vmatpush1.msra.mxu0 0.0
        %448 = vmatprep.subr.mxu0 0.0
        %449 = vmatpush1.msra.mxu0 0.0
        %450 = vmatprep.subr.mxu0 0.0
        %451 = vmatpush1.msra.mxu0 0.0
        %452 = vmatprep.subr.mxu0 0.0
        %453 = vmatpush1.msra.mxu0 0.0
        %454 = vmatprep.subr.mxu0 0.0
        %455 = vmatpush1.msra.mxu0 0.0
        %456 = vmatprep.subr.mxu0 0.0
        %457 = vmatpush1.msra.mxu0 0.0
        %458 = vmatprep.subr.mxu0 0.0
        %459 = vmatpush1.msra.mxu0 0.0
        %460 = vmatprep.subr.mxu0 0.0
        %461 = vmatpush1.msra.mxu0 0.0
        %462 = vmatprep.subr.mxu0 0.0
        %463 = vmatpush1.msra.mxu0 0.0
        %464 = vmatprep.subr.mxu0 0.0
        %465 = vmatpush1.msra.mxu0 0.0
        %466 = vmatprep.subr.mxu0 0.0
        %467 = vmatpush1.msra.mxu0 0.0
        %468 = vmatprep.subr.mxu0 0.0
        %469 = vmatpush1.msra.mxu0 0.0
        %470 = vmatprep.subr.mxu0 0.0
        %471 = vmatpush1.msra.mxu0 0.0
        %472 = vmatprep.subr.mxu0 0.0
        %473 = vmatpush1.msra.mxu0 0.0
        %474 = vmatprep.subr.mxu0 0.0
        %475 = vmatpush1.msra.mxu0 0.0
        %476 = vmatprep.subr.mxu0 0.0
        %477 = vmatpush1.msra.mxu0 0.0
        %478 = vmatprep.subr.mxu0 0.0
        %479 = vmatpush1.msra.mxu0 0.0
        %480 = vmatprep.subr.mxu0 0.0
        %481 = vmatpush1.msra.mxu0 0.0
        %482 = vmatprep.subr.mxu0 0.0
        %483 = vmatpush1.msra.mxu0 0.0
        %484 = vmatprep.subr.mxu0 0.0
        %485 = vmatpush1.msra.mxu0 0.0
        %486 = vmatprep.subr.mxu0 0.0
        %487 = vmatpush1.msra.mxu0 0.0
        %488 = vmatprep.subr.mxu0 0.0
        %489 = vmatpush1.msra.mxu0 0.0
        %490 = vmatprep.mubr.f32.mxu0 0.0
        %491 = vmatmul.mubr.f32.gmra.mrb[0].mxu0 %v411
        %v492 = vpop.f32.mrb[0].mxu0
        %v493 = vadd.f32 %v405, %v492
        %v494 = vpop.f32.mrb[0].mxu0
        %495 = vmatprep.mubr.f32.mxu0 0.0
        %496 = vmatmul.mubr.f32.gmra.mrb[0].mxu0 %v414
        %v497 = vpop.f32.mrb[0].mxu0
        %v498 = vadd.f32 %v406, %v497
        %v499 = vpop.f32.mrb[0].mxu0
        %500 = vmatprep.mubr.f32.mxu0 0.0
        %501 = vmatmul.mubr.f32.gmra.mrb[0].mxu0 %v417
        %v502 = vpop.f32.mrb[0].mxu0
        %v503 = vadd.f32 %v407, %v502
        %v504 = vpop.f32.mrb[0].mxu0
        %505 = vmatprep.mubr.f32.mxu0 0.0
        %506 = vmatmul.mubr.f32.gmra.mrb[0].mxu0 %v420
        %v507 = vpop.f32.mrb[0].mxu0
        %v508 = vadd.f32 %v408, %v507
        %v509 = vpop.f32.mrb[0].mxu0
        %510 = vdwg.mxu0
        %v511 = vxor.u32 %v493, 2147483648
        %v512 = vxor.u32 %v498, 2147483648
        %v513 = vxor.u32 %v503, 2147483648
        %v514 = vxor.u32 %v508, 2147483648
        %v515 = vmul.f32 %v511, 1.442695
        %v516 = vpow.pop %v515
        %v517 = vmul.f32 %v512, 1.442695
        %v518 = vpow.pop %v517
        %v519 = vmul.f32 %v513, 1.442695
        %v520 = vpow.pop %v519
        %v521 = vmul.f32 %v514, 1.442695
        %v522 = vpow.pop %v521
        %v523 = vadd.f32 %v516, 1.0
        %v524 = vadd.f32 %v518, 1.0
        %v525 = vadd.f32 %v520, 1.0
        %v526 = vadd.f32 %v522, 1.0
        %v527 = vrcp.pop %v523
        %v528 = vmul.f32 1.0, %v527
        %v529 = vrcp.pop %v524
        %v530 = vmul.f32 1.0, %v529
        %v531 = vrcp.pop %v525
        %v532 = vmul.f32 1.0, %v531
        %v533 = vrcp.pop %v526
        %v534 = vmul.f32 1.0, %v533
        %v535 = vld [vmem:[%s5] sm:$0x1]
        %v536 = vld [vmem:[#allocation2] sm:$0x1]
        %538 = vset.pattern.permute.xlu0 0
        %539 = vperm.xlu0 %538, %v536
        %v540 = vpop.permute.xlu0 %539
        %v542 = vlaneseq
        %v543 = vshrl.u32 %v542, 7
        %v544 = vsub.s32 0, %v543
        %v545 = vrot.slane %v540, %v544
        %v547 = vsel %vm326, %v535, 0
        %549 = vmatprep.subr.mxu0 %v300
        %550 = vmatpush1.msra.mxu0 %v299
        %551 = vmatprep.subr.mxu0 %v302
        %552 = vmatpush1.msra.mxu0 %v301
        %553 = vmatprep.subr.mxu0 %v304
        %554 = vmatpush1.msra.mxu0 %v303
        %555 = vmatprep.subr.mxu0 %v306
        %556 = vmatpush1.msra.mxu0 %v305
        %557 = vmatprep.subr.mxu0 0.0
        %558 = vmatpush1.msra.mxu0 0.0
        %559 = vmatprep.subr.mxu0 0.0
        %560 = vmatpush1.msra.mxu0 0.0
        %561 = vmatprep.subr.mxu0 0.0
        %562 = vmatpush1.msra.mxu0 0.0
        %563 = vmatprep.subr.mxu0 0.0
        %564 = vmatpush1.msra.mxu0 0.0
        %565 = vmatprep.subr.mxu0 0.0
        %566 = vmatpush1.msra.mxu0 0.0
        %567 = vmatprep.subr.mxu0 0.0
        %568 = vmatpush1.msra.mxu0 0.0
        %569 = vmatprep.subr.mxu0 0.0
        %570 = vmatpush1.msra.mxu0 0.0
        %571 = vmatprep.subr.mxu0 0.0
        %572 = vmatpush1.msra.mxu0 0.0
        %573 = vmatprep.subr.mxu0 0.0
        %574 = vmatpush1.msra.mxu0 0.0
        %575 = vmatprep.subr.mxu0 0.0
        %576 = vmatpush1.msra.mxu0 0.0
        %577 = vmatprep.subr.mxu0 0.0
        %578 = vmatpush1.msra.mxu0 0.0
        %579 = vmatprep.subr.mxu0 0.0
        %580 = vmatpush1.msra.mxu0 0.0
        %581 = vmatprep.subr.mxu0 0.0
        %582 = vmatpush1.msra.mxu0 0.0
        %583 = vmatprep.subr.mxu0 0.0
        %584 = vmatpush1.msra.mxu0 0.0
        %585 = vmatprep.subr.mxu0 0.0
        %586 = vmatpush1.msra.mxu0 0.0
        %587 = vmatprep.subr.mxu0 0.0
        %588 = vmatpush1.msra.mxu0 0.0
        %589 = vmatprep.subr.mxu0 0.0
        %590 = vmatpush1.msra.mxu0 0.0
        %591 = vmatprep.subr.mxu0 0.0
        %592 = vmatpush1.msra.mxu0 0.0
        %593 = vmatprep.subr.mxu0 0.0
        %594 = vmatpush1.msra.mxu0 0.0
        %595 = vmatprep.subr.mxu0 0.0
        %596 = vmatpush1.msra.mxu0 0.0
        %597 = vmatprep.subr.mxu0 0.0
        %598 = vmatpush1.msra.mxu0 0.0
        %599 = vmatprep.subr.mxu0 0.0
        %600 = vmatpush1.msra.mxu0 0.0
        %601 = vmatprep.subr.mxu0 0.0
        %602 = vmatpush1.msra.mxu0 0.0
        %603 = vmatprep.subr.mxu0 0.0
        %604 = vmatpush1.msra.mxu0 0.0
        %605 = vmatprep.subr.mxu0 0.0
        %606 = vmatpush1.msra.mxu0 0.0
        %607 = vmatprep.subr.mxu0 0.0
        %608 = vmatpush1.msra.mxu0 0.0
        %609 = vmatprep.subr.mxu0 0.0
        %610 = vmatpush1.msra.mxu0 0.0
        %611 = vmatprep.subr.mxu0 0.0
        %612 = vmatpush1.msra.mxu0 0.0
        %613 = vmatprep.mubr.f32.mxu0 0.0
        %614 = vmatmul.mubr.f32.gmra.mrb[0].mxu0 %v547
        %v615 = vpop.f32.mrb[0].mxu0
        %v616 = vadd.f32 %v545, %v615
        %v617 = vpop.f32.mrb[0].mxu0
        %v618 = vadd.f32 %v545, %v617
        %619 = vdwg.mxu0
        %v620 = vxor.u32 %v616, 2147483648
        %v621 = vxor.u32 %v618, 2147483648
        %v622 = vmul.f32 %v620, 1.442695
        %v623 = vpow.pop %v622
        %v624 = vmul.f32 %v621, 1.442695
        %v625 = vpow.pop %v624
        %v626 = vadd.f32 %v623, 1.0
        %v627 = vadd.f32 %v625, 1.0
        %v628 = vrcp.pop %v626
        %v629 = vmul.f32 1.0, %v628
        %v630 = vrcp.pop %v627
        %v631 = vmul.f32 1.0, %v630
        %633 = vset.pattern.permute.xlu0 0
        %634 = vperm.xlu0 %633, %v528
        %v635 = vpop.permute.xlu0 %634
        %638 = vset.pattern.permute.xlu0 0
        %639 = vperm.xlu0 %638, %v530
        %v640 = vpop.permute.xlu0 %639
        %643 = vset.pattern.permute.xlu0 0
        %644 = vperm.xlu0 %643, %v532
        %v645 = vpop.permute.xlu0 %644
        %648 = vset.pattern.permute.xlu0 0
        %649 = vperm.xlu0 %648, %v534
        %v650 = vpop.permute.xlu0 %649
        %v652 = vlaneseq
        %v653 = vshrl.u32 %v652, 7
        %v654 = vsub.s32 0, %v653
        %v655 = vrot.slane %v629, %v654
        %v656 = vlaneseq
        %v657 = vshrl.u32 %v656, 7
        %v658 = vsub.s32 0, %v657
        %v659 = vrot.slane %v631, %v658
        %v660 = vadd.f32 %v635, %v655
        %v661 = vadd.f32 %v635, %v659
        %v662 = vadd.f32 %v640, %v655
        %v663 = vadd.f32 %v640, %v659
        %v664 = vadd.f32 %v645, %v655
        %v665 = vadd.f32 %v645, %v659
        %v666 = vadd.f32 %v650, %v655
        %v667 = vadd.f32 %v650, %v659
        %v668 = vmul.f32 %v299, %v660
        %v669 = vmul.f32 %v300, %v661
        %v670 = vmul.f32 %v301, %v662
        %v671 = vmul.f32 %v302, %v663
        %v672 = vmul.f32 %v303, %v664
        %v673 = vmul.f32 %v304, %v665
        %v674 = vmul.f32 %v305, %v666
        %v675 = vmul.f32 %v306, %v667
        %676 = vst [vmem:[%s298] sm:$0xff] %v668
        %677 = vst [vmem:[%s298 + $0x8] sm:$0xff] %v669
        %678 = vst [vmem:[%s298 + $0x10] sm:$0xff] %v670
        %679 = vst [vmem:[%s298 + $0x18] sm:$0xff] %v671
        %680 = vst [vmem:[%s298 + $0x20] sm:$0xff] %v672
        %681 = vst [vmem:[%s298 + $0x28] sm:$0xff] %v673
        %682 = vst [vmem:[%s298 + $0x30] sm:$0xff] %v674
        %683 = vst [vmem:[%s298 + $0x38] sm:$0xff] %v675
        %s684 = sand.u32 %s186, 1
        %s685 = scalar_lea.sflag [#allocation5], %s684
        %s686 = sand.u32 %s186, 1
        %s687 = smul.addr %s686, 64
        %s688 = scalar_lea.vmem [#allocation6], %s687
        // Predicated region
        $region53: #{tpu_custom_call.1} parent=47 // pred_check
          %p689 = pneg %p196
        $region54: #{tpu_custom_call.1} parent=47 // pred_check_branch
          %691 = sbr.rel (%p689) target = $region56
        $region55: #{tpu_custom_call.1} parent=47 // pred_region
          %s693 = ssub.s32 1024, 1024
          %694 = vsyncadd %s685, %s693
          %s695 = smul.addr %s26, 8
          %s696 = smul.addr %s695, 128
          %s697 = scalar_lea.hbm %s7, %s696
          %s698 = sshll.u32 %s688, 4
          %s699 = int_to_ptr.vmem [resolvable:$true] %s698
          %704 = dma.vmem_to_hbm [thread:$0]  %s699, 1024, %s697, %s685, 256, 256, 16
        $region56: #{tpu_custom_call.1} parent=47 // pred_fallthru
          _
      $region48: #{tpu_custom_call.1} parent=5 // pred_fallthru
        _
      %p705 = scmp.le.s32.totalorder 2, %s21
      // Predicated region
      $region57: #{tpu_custom_call.1} parent=5 // pred_check
        %p706 = pneg %p705
      $region58: #{tpu_custom_call.1} parent=5 // pred_check_branch
        %708 = sbr.rel (%p706) target = $region60
      $region59: #{tpu_custom_call.1} parent=5 // pred_region
        %s709 = ssub.s32 %s21, 2
        // Predicated region
        $region61: #{tpu_custom_call.1} parent=59 // pred_check
          %p710 = pneg %p202
        $region62: #{tpu_custom_call.1} parent=59 // pred_check_branch
          %712 = sbr.rel (%p710) target = $region64
        $region63: #{tpu_custom_call.1} parent=59 // pred_region
          %s713 = sand.u32 %s187, 1
          %s714 = scalar_lea.sflag [#allocation5], %s713
          %s715 = sand.u32 %s187, 1
          %s716 = smul.addr %s715, 64
          %s717 = scalar_lea.vmem [#allocation6], %s716
          %718 = dma.done %s714, 1024
        $region64: #{tpu_custom_call.1} parent=59 // pred_fallthru
          _
      $region60: #{tpu_custom_call.1} parent=5 // pred_fallthru
        _
    $region6: #{tpu_custom_call.1} parent=1 // loop_footer
      %s25 = sadd.s32 1, %s21
    $region7: #{tpu_custom_call.1} parent=1 // loop_footer_branch
      %20 = sbr.rel target = $region3
    $region8: #{tpu_custom_call.1} parent=1 // loop_exit
      _
    %719 = vsyncpa [#allocation4], 1
    %s720 = scalar_lea.sflag [#allocation4], 1
    %721 = vsyncpa %s720, 1
    %722 = vsyncpa [#allocation5], 1
    %s723 = scalar_lea.sflag [#allocation5], 1
    %724 = vsyncpa %s723, 1

</llo_original>
